<compile_context>
chip_gen: v6e
topology: v6e:2x2x1
jax: 0.10.0
libtpu: 0.0.40
codegen_flags: <defaults>
</compile_context>

<pallas_src>
import functools

import jax
import jax.numpy as jnp
from jax.experimental import pallas as pl
from jax.experimental.pallas import tpu as pltpu


def _round_up(x: int, m: int) -> int:
    return ((x + m - 1) // m) * m


def _row_absdot_kernel(c_ref, s_ref, out_ref, *, seg: int, pack: int):
    """Per-row |dot| for a (TB, pack*seg) tile.

    Each 128-lane row packs `pack` original rows of `seg` features; column j of
    the (TB, pack) output block receives |sum(prod[:, j*seg:(j+1)*seg])|.
    """
    c = c_ref[...]
    s = s_ref[...]
    if c.dtype != jnp.float32:
        c = c.astype(jnp.float32)      # single explicit upcast; products in f32
    prod = c * s                        # (TB, pack*seg) float32
    for j in range(pack):               # static unroll; pack <= 16
        dot_j = jnp.sum(prod[:, j * seg:(j + 1) * seg], axis=-1, keepdims=True)
        out_ref[:, j:j + 1] = jnp.abs(dot_j)          # (TB, 1) column store


def _plan_tiles(num_rows: int, width: int, itemsize: int, block_rows=None):
    """Pick the batch tile TB and a matching scoped-VMEM limit."""
    try:
        cap = int(pltpu.get_tpu_info().vmem_capacity_bytes)
    except Exception:  # conservative fallback (v7x per-TC VMEM)
        cap = 64 << 20
    budget = min(cap // 2, 64 << 20)    # 64 MiB on 128-MiB parts, 32 MiB on v7x
    wpad = _round_up(width, 128)        # lane-padded VMEM width per row
    # Resident bytes per tile row: 2 inputs x 2 pipeline buffers plus ~2
    # f32-wide elementwise intermediates (upcast + product) so big tiles do
    # not spill.
    per_row = 4 * wpad * itemsize + 8 * wpad
    fits = 8 * per_row <= budget        # can even a minimal (8, width) tile fit?
    tb_max = max(8, (budget // max(per_row, 1) // 8) * 8)
    tb = tb_max if block_rows is None else max(8, (int(block_rows) // 8) * 8)
    tb = min(tb, tb_max, _round_up(max(num_rows, 1), 8))
    vmem_limit = max(32 << 20, min(cap - (8 << 20), tb * per_row + (16 << 20)))
    return tb, int(vmem_limit), fits


def _reference(common, specific):
    # Pure-JAX reference mirroring the PyTorch loop (f32 accumulation).
    c = common.astype(jnp.float32)
    s = specific.astype(jnp.float32)
    return jnp.mean(jnp.abs(jnp.sum(c * s, axis=-1)))


def orthogonal_loss(common: jax.Array,
                    specific: jax.Array,
                    *,
                    block_rows: int | None = None,
                    pack_small_features: bool = True,
                    small_input_fast_path: bool = False) -> jax.Array:
    """Pallas implementation of OrthogonalLoss.forward for (B, D) inputs."""
    assert common.ndim == 2 and common.shape == specific.shape
    B, D = common.shape
    if common.dtype != specific.dtype:
        dt = jnp.result_type(common.dtype, specific.dtype)
        common, specific = common.astype(dt), specific.astype(dt)
    itemsize = jnp.dtype(common.dtype).itemsize

    if small_input_fast_path and B * D * itemsize < (1 << 20):
        return _reference(common, specific)

    # Lane packing for narrow feature dims: fold `pack` rows into one 128-lane
    # row via a free, contiguous reshape (only when it divides evenly).
    pack = 1
    if pack_small_features and D < 128 and 128 % D == 0:
        cand = 128 // D
        if cand <= 16 and B % cand == 0:
            pack = cand
    rows, width = B // pack, pack * D
    c2 = common.reshape(rows, width) if pack > 1 else common
    s2 = specific.reshape(rows, width) if pack > 1 else specific

    tb, vmem_limit, fits = _plan_tiles(rows, width, itemsize, block_rows)
    if not fits:
        # TODO(synk): add a D-tiled variant (per-row f32 accumulator across K
        # steps, abs only on the last step) for feature dims too large for VMEM.
        return _reference(common, specific)

    grid = pl.cdiv(rows, tb)
    cost = pl.CostEstimate(
        flops=2 * rows * width,
        bytes_accessed=2 * rows * width * itemsize + rows * pack * 4,
        transcendentals=0,
    )

    row_abs = pl.pallas_call(
        functools.partial(_row_absdot_kernel, seg=D, pack=pack),
        out_shape=jax.ShapeDtypeStruct((rows, pack), jnp.float32),
        grid_spec=pltpu.PrefetchScalarGridSpec(
            num_scalar_prefetch=0,
            grid=(grid,),
            in_specs=[
                pl.BlockSpec((tb, width), lambda i: (i, 0)),
                pl.BlockSpec((tb, width), lambda i: (i, 0)),
            ],
            out_specs=pl.BlockSpec((tb, pack), lambda i: (i, 0)),
        ),
        compiler_params=pltpu.CompilerParams(
            dimension_semantics=("parallel",),
            vmem_limit_bytes=vmem_limit),
        cost_estimate=cost,
    )(c2, s2)

    # Tiny final mean in plain JAX over exactly B valid per-row |dot| values
    # (ragged-block garbage rows were dropped by the clipped output writeback).
    return jnp.sum(row_abs) / jnp.float32(B)


if __name__ == "__main__":
    key = jax.random.PRNGKey(0)
    k1, k2, k3, k4, k5, k6 = jax.random.split(key, 6)

    # Case 1: narrow features (D=32) -> lane-packed path (pack=4, width=128).
    B1, D1 = 32, 32
    c1 = jax.random.normal(k1, (B1, D1), dtype=jnp.float32)
    s1 = jax.random.normal(k2, (B1, D1), dtype=jnp.float32)
    out1 = orthogonal_loss(c1, s1)
    jax.block_until_ready(out1)
    assert jnp.allclose(out1, _reference(c1, s1), rtol=1e-5, atol=1e-5), out1

    # Case 2: ragged batch in bf16 with full-width features -> unpacked path,
    # multi-step grid, ragged last block handled by clipped writeback,
    # in-kernel f32 upcast of one operand.
    B2, D2 = 20, 128
    c2 = jax.random.normal(k3, (B2, D2), dtype=jnp.bfloat16)
    s2 = jax.random.normal(k4, (B2, D2), dtype=jnp.bfloat16)
    out2 = orthogonal_loss(c2, s2, block_rows=8)
    jax.block_until_ready(out2)
    assert jnp.allclose(out2, _reference(c2, s2), rtol=1e-4, atol=1e-4), out2

    # Case 3: multi-tile pipelined grid + packed path (D=64 -> pack=2).
    B3, D3 = 2048, 64
    c3 = jax.random.normal(k5, (B3, D3), dtype=jnp.float32)
    s3 = jax.random.normal(k6, (B3, D3), dtype=jnp.float32)
    out3 = orthogonal_loss(c3, s3, block_rows=256)
    jax.block_until_ready(out3)
    assert jnp.allclose(out3, _reference(c3, s3), rtol=1e-4, atol=1e-4), out3

    print("KERNEL_OK")
</pallas_src>

<mosaic_0001>
module attributes {stable_mosaic.version = 11 : i64} {
  func.func @_row_absdot_kernel(%arg0: i32, %arg1: memref<8x128xf32, #tpu.memory_space<vmem>>, %arg2: memref<8x128xf32, #tpu.memory_space<vmem>>, %arg3: memref<8x4xf32, #tpu.memory_space<vmem>>) attributes {dimension_semantics = [#tpu.dimension_semantics<parallel>], iteration_bounds = array<i64: 1>, scalar_prefetch = 0 : i64, scratch_operands = 0 : i64, tpu.core_type = #tpu.core_type<tc>, window_params = [{transform_indices = @transform_0, window_bounds = array<i64: 8, 128>}, {transform_indices = @transform_1, window_bounds = array<i64: 8, 128>}, {transform_indices = @transform_2, window_bounds = array<i64: 8, 4>}]} {
    %c0 = arith.constant 0 : index
    %c0_0 = arith.constant 0 : index
    %0 = vector.load %arg1[%c0, %c0_0] : memref<8x128xf32, #tpu.memory_space<vmem>>, vector<8x128xf32>
    %c0_1 = arith.constant 0 : index
    %c0_2 = arith.constant 0 : index
    %1 = vector.load %arg2[%c0_1, %c0_2] : memref<8x128xf32, #tpu.memory_space<vmem>>, vector<8x128xf32>
    %2 = arith.mulf %0, %1 : vector<8x128xf32>
    %3 = vector.extract_strided_slice %2 {offsets = [0, 0], sizes = [8, 32], strides = [1, 1]} : vector<8x128xf32> to vector<8x32xf32>
    %cst = arith.constant dense<0.000000e+00> : vector<8xf32>
    %4 = vector.multi_reduction <add>, %3, %cst [1] : vector<8x32xf32> to vector<8xf32>
    %5 = vector.shape_cast %4 : vector<8xf32> to vector<8x1xf32>
    %6 = math.absf %5 : vector<8x1xf32>
    %c0_3 = arith.constant 0 : index
    %c0_4 = arith.constant 0 : index
    %7 = vector.load %arg3[%c0_3, %c0_4] : memref<8x4xf32, #tpu.memory_space<vmem>>, vector<8x1xf32>
    tpu.vector_store %arg3[%c0_3, %c0_4], %6 {strides = array<i32>} : memref<8x4xf32, #tpu.memory_space<vmem>>, vector<8x1xf32>,
    %8 = vector.extract_strided_slice %2 {offsets = [0, 32], sizes = [8, 32], strides = [1, 1]} : vector<8x128xf32> to vector<8x32xf32>
    %cst_5 = arith.constant dense<0.000000e+00> : vector<8xf32>
    %9 = vector.multi_reduction <add>, %8, %cst_5 [1] : vector<8x32xf32> to vector<8xf32>
    %10 = vector.shape_cast %9 : vector<8xf32> to vector<8x1xf32>
    %11 = math.absf %10 : vector<8x1xf32>
    %c0_6 = arith.constant 0 : index
    %c1 = arith.constant 1 : index
    %12 = vector.load %arg3[%c0_6, %c1] : memref<8x4xf32, #tpu.memory_space<vmem>>, vector<8x1xf32>
    tpu.vector_store %arg3[%c0_6, %c1], %11 {strides = array<i32>} : memref<8x4xf32, #tpu.memory_space<vmem>>, vector<8x1xf32>,
    %13 = vector.extract_strided_slice %2 {offsets = [0, 64], sizes = [8, 32], strides = [1, 1]} : vector<8x128xf32> to vector<8x32xf32>
    %cst_7 = arith.constant dense<0.000000e+00> : vector<8xf32>
    %14 = vector.multi_reduction <add>, %13, %cst_7 [1] : vector<8x32xf32> to vector<8xf32>
    %15 = vector.shape_cast %14 : vector<8xf32> to vector<8x1xf32>
    %16 = math.absf %15 : vector<8x1xf32>
    %c0_8 = arith.constant 0 : index
    %c2 = arith.constant 2 : index
    %17 = vector.load %arg3[%c0_8, %c2] : memref<8x4xf32, #tpu.memory_space<vmem>>, vector<8x1xf32>
    tpu.vector_store %arg3[%c0_8, %c2], %16 {strides = array<i32>} : memref<8x4xf32, #tpu.memory_space<vmem>>, vector<8x1xf32>,
    %18 = vector.extract_strided_slice %2 {offsets = [0, 96], sizes = [8, 32], strides = [1, 1]} : vector<8x128xf32> to vector<8x32xf32>
    %cst_9 = arith.constant dense<0.000000e+00> : vector<8xf32>
    %19 = vector.multi_reduction <add>, %18, %cst_9 [1] : vector<8x32xf32> to vector<8xf32>
    %20 = vector.shape_cast %19 : vector<8xf32> to vector<8x1xf32>
    %21 = math.absf %20 : vector<8x1xf32>
    %c0_10 = arith.constant 0 : index
    %c3 = arith.constant 3 : index
    %22 = vector.load %arg3[%c0_10, %c3] : memref<8x4xf32, #tpu.memory_space<vmem>>, vector<8x1xf32>
    tpu.vector_store %arg3[%c0_10, %c3], %21 {strides = array<i32>} : memref<8x4xf32, #tpu.memory_space<vmem>>, vector<8x1xf32>,
    return
  }
  func.func @transform_0(%arg0: i32) -> (i32, i32) {
    %c0_i32 = arith.constant 0 : i32
    %c0_i32_0 = arith.constant 0 : i32
    return %arg0, %c0_i32 : i32, i32
  }
  func.func @transform_1(%arg0: i32) -> (i32, i32) {
    %c0_i32 = arith.constant 0 : i32
    %c0_i32_0 = arith.constant 0 : i32
    return %arg0, %c0_i32 : i32, i32
  }
  func.func @transform_2(%arg0: i32) -> (i32, i32) {
    %c0_i32 = arith.constant 0 : i32
    %c0_i32_0 = arith.constant 0 : i32
    return %arg0, %c0_i32 : i32, i32
  }
}

</mosaic_0001>

<llo_original>
// kernel: tpu_custom_call.1
$region0: #{tpu_custom_call.1}
  #allocation0 [shape = 'u32[]', space=smem, size = 0x4, offset = 0x4, fixed_abs, tag = 'smem constant byte address 0x4 - core index']
  #allocation1 [shape = 'u32[144,128]{1,0:T(1,128)}', space=vmem, size = 0x12000, scoped, tag = 'internal scratch']
  %s0 = inlined_call_operand.hbm [shape: f32[8,128], index: 0, kind: input, shape index: {}]
  %s1 = inlined_call_operand.hbm [shape: f32[8,128], index: 1, kind: input, shape index: {}]
  %s2 = inlined_call_operand.vmem [shape: f32[8,4], index: 2, kind: output, shape index: {}]
  %s3 = sld [smem:[#allocation0]]
  $region26: #{tpu_custom_call.1} parent=0
    _
  %s5 = ssub.s32 1, %s3
  %s6 = scalar_select 0, %s5, %s3
  $region1: #{tpu_custom_call.1} parent=0
    #allocation2 [shape = 'u8[4096]{0}', space=vmem, size = 0x1000, scoped, tag = 'input window, operand 0, single buffered']
    #allocation3 [shape = 's32[1]{0}', space=sflag, size = 0x4, scoped, tag = 'scoped memory for tpu_custom_call.1']
    #allocation4 [shape = 'u8[4096]{0}', space=vmem, size = 0x1000, scoped, tag = 'input window, operand 1, single buffered']
    #allocation5 [shape = 's32[1]{0}', space=sflag, size = 0x4, scoped, tag = 'scoped memory for tpu_custom_call.1']
    %7 = vsyncpa [#allocation3], 0
    %8 = vsyncpa [#allocation5], 0
    // Predicated region
    $region2: #{tpu_custom_call.1} parent=1 // pred_check
      _
    $region3: #{tpu_custom_call.1} parent=1 // pred_check_branch
      %10 = sbr.rel (0) target = $region5
    $region4: #{tpu_custom_call.1} parent=1 // pred_region
      %s12 = ssub.s32 128, 128
      %13 = vsyncadd [#allocation3], %s12
      %s15 = sshll.u32 [#allocation2], 4
      %s16 = int_to_ptr.vmem [resolvable:$true] %s15
      %18 = dma.hbm_to_vmem [thread:$0]  %s0, 128, %s16, [#allocation3]
    $region5: #{tpu_custom_call.1} parent=1 // pred_fallthru
      _
    // Predicated region
    $region6: #{tpu_custom_call.1} parent=1 // pred_check
      _
    $region7: #{tpu_custom_call.1} parent=1 // pred_check_branch
      %20 = sbr.rel (0) target = $region9
    $region8: #{tpu_custom_call.1} parent=1 // pred_region
      %s22 = ssub.s32 128, 128
      %23 = vsyncadd [#allocation5], %s22
      %s25 = sshll.u32 [#allocation4], 4
      %s26 = int_to_ptr.vmem [resolvable:$true] %s25
      %28 = dma.hbm_to_vmem [thread:$0]  %s1, 128, %s26, [#allocation5]
    $region9: #{tpu_custom_call.1} parent=1 // pred_fallthru
      _
    // Predicated region
    $region10: #{tpu_custom_call.1} parent=1 // pred_check
      _
    $region11: #{tpu_custom_call.1} parent=1 // pred_check_branch
      %30 = sbr.rel (0) target = $region13
    $region12: #{tpu_custom_call.1} parent=1 // pred_region
      %31 = dma.done [#allocation3], 128
    $region13: #{tpu_custom_call.1} parent=1 // pred_fallthru
      _
    // Predicated region
    $region14: #{tpu_custom_call.1} parent=1 // pred_check
      _
    $region15: #{tpu_custom_call.1} parent=1 // pred_check_branch
      %33 = sbr.rel (0) target = $region17
    $region16: #{tpu_custom_call.1} parent=1 // pred_region
      %34 = dma.done [#allocation5], 128
    $region17: #{tpu_custom_call.1} parent=1 // pred_fallthru
      _
    %v35 = vld [vmem:[#allocation2] sm:$0xff]
    %v36 = vld [vmem:[#allocation4] sm:$0xff]
    %v37 = vmul.f32 %v35, %v36
    %vm38 = vcmask 261120
    %v39 = vsel %vm38, %v37, 0.0
    %40 = vadd.xlane.f32.xlu0 %v39
    %v41 = vpop.xlane.xlu0 %40
    %v42 = vand.u32 2147483647, %v41
    %vm43 = vcmask 7168
    %44 = vst.msk [vmem:[%s2] sm:$0xff] %vm43, %v42
    %46 = vrot.lane.b32.xlu0 %v37, 96
    %v47 = vpop.permute.xlu0 %46
    %v49 = vsel %vm38, %v47, 0.0
    %50 = vadd.xlane.f32.xlu0 %v49
    %v51 = vpop.xlane.xlu0 %50
    %v52 = vand.u32 2147483647, %v51
    %vm53 = vcmask 15368
    %54 = vst.msk [vmem:[%s2] sm:$0xff] %vm53, %v52
    %55 = vrot.lane.b32.xlu0 %v37, 64
    %v56 = vpop.permute.xlu0 %55
    %v58 = vsel %vm38, %v56, 0.0
    %59 = vadd.xlane.f32.xlu0 %v58
    %v60 = vpop.xlane.xlu0 %59
    %v61 = vand.u32 2147483647, %v60
    %vm62 = vcmask 23568
    %63 = vst.msk [vmem:[%s2] sm:$0xff] %vm62, %v61
    %64 = vrot.lane.b32.xlu0 %v37, 32
    %v65 = vpop.permute.xlu0 %64
    %v67 = vsel %vm38, %v65, 0.0
    %68 = vadd.xlane.f32.xlu0 %v67
    %v69 = vpop.xlane.xlu0 %68
    %v70 = vand.u32 2147483647, %v69
    %vm71 = vcmask 31768
    %72 = vst.msk [vmem:[%s2] sm:$0xff] %vm71, %v70
    // Predicated region
    $region18: #{tpu_custom_call.1} parent=1 // pred_check
      _
    $region19: #{tpu_custom_call.1} parent=1 // pred_check_branch
      %74 = sbr.rel (0) target = $region21
    $region20: #{tpu_custom_call.1} parent=1 // pred_region
      _
    $region21: #{tpu_custom_call.1} parent=1 // pred_fallthru
      _
    // Predicated region
    $region22: #{tpu_custom_call.1} parent=1 // pred_check
      _
    $region23: #{tpu_custom_call.1} parent=1 // pred_check_branch
      %76 = sbr.rel (0) target = $region25
    $region24: #{tpu_custom_call.1} parent=1 // pred_region
      _
    $region25: #{tpu_custom_call.1} parent=1 // pred_fallthru
      _
    %77 = vsyncpa [#allocation3], 1
    %78 = vsyncpa [#allocation5], 1

</llo_original>
